<compile_context>
chip_gen: v7x
topology: tpu7x:2x2x1
jax: 0.10.0
libtpu: 0.0.40
codegen_flags: <defaults>
</compile_context>

<pallas_src>
import jax
import jax.numpy as jnp
import numpy as np
from jax import lax
from jax.experimental import pallas as pl
from jax.experimental.pallas import tpu as pltpu  # noqa: F401  (TPU backend)


LANE = 128  # TPU lane width — output slab padded to a multiple of this.


def _fused_slp_gcn_kernel(a_ref, x_ref, w_enc_ref, b_enc_ref,
                          w_gcn_ref, b_gcn_ref, w_dec_ref, b_dec_ref,
                          o_ref):
    """All four GraphConv layers fused; whole problem lives in VMEM/vregs."""
    f32 = jnp.float32
    a = a_ref[...]                      # [N, N]   normalized adjacency
    x = x_ref[...]                      # [N, Fin]

    # ---- encoder: F_in < F_out  ->  (A @ X) @ W is the cheaper order ----
    ax = jnp.dot(a, x, preferred_element_type=f32)
    h1 = jnp.dot(ax, w_enc_ref[...], preferred_element_type=f32) + b_enc_ref[...]
    h1 = jnp.maximum(h1, 0.0)

    # ---- gcn layer #1 (square weights): h2 = relu(A @ (h1 @ Wg) + bg) ----
    w_gcn = w_gcn_ref[...]
    b_gcn = b_gcn_ref[...]
    h2 = jnp.dot(a, jnp.dot(h1, w_gcn, preferred_element_type=f32),
                 preferred_element_type=f32) + b_gcn
    h2 = jnp.maximum(h2, 0.0)

    # ---- layers 3 & 4 fused: both read h2, so stack [W_dec | W_gcn] and do one
    #      matmul chain.  Column order chosen so the result is already [h4 | h3]. ----
    out_f = w_dec_ref.shape[1]
    h_f = w_gcn.shape[1]
    w_cat = jnp.concatenate([w_dec_ref[...], w_gcn], axis=-1)        # [H, OUT+H]
    b_cat = jnp.concatenate([b_dec_ref[...], b_gcn], axis=-1)        # [1, OUT+H]
    h34 = jnp.dot(a, jnp.dot(h2, w_cat, preferred_element_type=f32),
                  preferred_element_type=f32) + b_cat                # [N, OUT+H]
    # relu only on the gcn (h3) columns; decoder (h4) columns pass through.
    col = lax.broadcasted_iota(jnp.int32, h34.shape, 1)
    h34 = jnp.where(col >= out_f, jnp.maximum(h34, 0.0), h34)

    # ---- lane-dense packing: [h4 | h3 | h2 | zero-pad] -> single [N, 128] store ----
    n = o_ref.shape[0]
    pad = o_ref.shape[1] - (out_f + 2 * h_f)
    slab = jnp.concatenate([h34, h2, jnp.zeros((n, pad), f32)], axis=-1)
    o_ref[...] = slab.astype(o_ref.dtype)


def slp_gcn_4node_forward(a_hat, x, params):
    """Pallas implementation of SLP_GCN_4node.forward → (h4, h3, h2)."""
    n, in_f = x.shape
    h_f = params["w_gcn"].shape[1]
    out_f = params["w_dec"].shape[1]

    packed_w = out_f + 2 * h_f
    slab_w = ((packed_w + LANE - 1) // LANE) * LANE

    # Advisory cost hint (tiny kernel; helps XLA schedule around the custom call).
    flops = 2 * (n * n * in_f + n * in_f * h_f                       # encoder
                 + n * h_f * h_f + n * n * h_f                       # gcn #1
                 + n * h_f * (h_f + out_f) + n * n * (h_f + out_f))  # gcn#2 + dec fused
    bytes_in = 4 * (a_hat.size + x.size
                    + params["w_enc"].size + params["b_enc"].size
                    + params["w_gcn"].size + params["b_gcn"].size
                    + params["w_dec"].size + params["b_dec"].size)
    bytes_out = 4 * n * slab_w

    full = lambda arr: pl.BlockSpec(arr.shape, lambda: (0, 0))

    slab = pl.pallas_call(
        _fused_slp_gcn_kernel,
        out_shape=jax.ShapeDtypeStruct((n, slab_w), jnp.float32),
        # grid=() — full-array blocks; the whole problem (~5 KiB) fits VMEM easily.
        in_specs=[
            full(a_hat),
            full(x),
            full(params["w_enc"]), full(params["b_enc"]),
            full(params["w_gcn"]), full(params["b_gcn"]),
            full(params["w_dec"]), full(params["b_dec"]),
        ],
        out_specs=pl.BlockSpec((n, slab_w), lambda: (0, 0)),
        cost_estimate=pl.CostEstimate(flops=flops, transcendentals=0,
                                      bytes_accessed=bytes_in + bytes_out),
    )(a_hat, x,
      params["w_enc"], params["b_enc"],
      params["w_gcn"], params["b_gcn"],
      params["w_dec"], params["b_dec"])

    h4 = slab[:, :out_f]
    h3 = slab[:, out_f:out_f + h_f]
    h2 = slab[:, out_f + h_f:out_f + 2 * h_f]
    return h4, h3, h2


def build_norm_adj(n):
    """Symmetric ring graph, DGL 'both' normalization: D^{-1/2} A D^{-1/2} (no self-loops)."""
    src = jnp.arange(n)
    dst = (src + 1) % n
    a = jnp.zeros((n, n), jnp.float32)
    a = a.at[src, dst].set(1.0)
    a = a.at[dst, src].set(1.0)
    deg = a.sum(axis=1)
    # Guard isolated nodes (deg=0) against inf/NaN (DGL would raise instead).
    d_inv_sqrt = jnp.where(deg > 0, 1.0 / jnp.sqrt(jnp.maximum(deg, 1.0)), 0.0)
    return d_inv_sqrt[:, None] * a * d_inv_sqrt[None, :]


def glorot_uniform(key, fan_in, fan_out):
    limit = (6.0 / (fan_in + fan_out)) ** 0.5
    return jax.random.uniform(key, (fan_in, fan_out), jnp.float32, -limit, limit)


def _reference_forward(a_hat, x, params):
    """Pure-jnp reference (A_hat @ (X @ W) + b) for correctness checking."""
    def layer(h, w, b, relu):
        y = a_hat @ (h @ w) + b
        return jnp.maximum(y, 0.0) if relu else y
    h1 = layer(x, params["w_enc"], params["b_enc"], True)
    h2 = layer(h1, params["w_gcn"], params["b_gcn"], True)
    h3 = layer(h2, params["w_gcn"], params["b_gcn"], True)
    h4 = layer(h2, params["w_dec"], params["b_dec"], False)
    return h4, h3, h2


if __name__ == "__main__":
    N, IN_FEATS, H_FEATS, OUT_FEATS = 8, 16, 32, 8

    key = jax.random.PRNGKey(0)
    k_x, k_enc, k_gcn, k_dec = jax.random.split(key, 4)

    x = jax.random.normal(k_x, (N, IN_FEATS), jnp.float32)
    a_hat = build_norm_adj(N)

    # DGL GraphConv default init: xavier_uniform_ weights, zero bias.
    params = {
        "w_enc": glorot_uniform(k_enc, IN_FEATS, H_FEATS),
        "b_enc": jnp.zeros((1, H_FEATS), jnp.float32),
        "w_gcn": glorot_uniform(k_gcn, H_FEATS, H_FEATS),
        "b_gcn": jnp.zeros((1, H_FEATS), jnp.float32),
        "w_dec": glorot_uniform(k_dec, H_FEATS, OUT_FEATS),
        "b_dec": jnp.zeros((1, OUT_FEATS), jnp.float32),
    }

    h4, h3, h2 = jax.jit(slp_gcn_4node_forward)(a_hat, x, params)
    jax.block_until_ready((h4, h3, h2))

    assert h4.shape == (N, OUT_FEATS)
    assert h3.shape == (N, H_FEATS)
    assert h2.shape == (N, H_FEATS)

    r4, r3, r2 = _reference_forward(a_hat, x, params)
    np.testing.assert_allclose(np.asarray(h4), np.asarray(r4), rtol=1e-4, atol=1e-4)
    np.testing.assert_allclose(np.asarray(h3), np.asarray(r3), rtol=1e-4, atol=1e-4)
    np.testing.assert_allclose(np.asarray(h2), np.asarray(r2), rtol=1e-4, atol=1e-4)

    print("KERNEL_OK")
</pallas_src>

<mosaic_0001>
module attributes {stable_mosaic.version = 11 : i64} {
  func.func @_fused_slp_gcn_kernel(%arg0: memref<8x8xf32, #tpu.memory_space<vmem>>, %arg1: memref<8x16xf32, #tpu.memory_space<vmem>>, %arg2: memref<16x32xf32, #tpu.memory_space<vmem>>, %arg3: memref<1x32xf32, #tpu.memory_space<vmem>>, %arg4: memref<32x32xf32, #tpu.memory_space<vmem>>, %arg5: memref<1x32xf32, #tpu.memory_space<vmem>>, %arg6: memref<32x8xf32, #tpu.memory_space<vmem>>, %arg7: memref<1x8xf32, #tpu.memory_space<vmem>>, %arg8: memref<8x128xf32, #tpu.memory_space<vmem>>) attributes {dimension_semantics = [], scalar_prefetch = 0 : i64, scratch_operands = 0 : i64, tpu.core_type = #tpu.core_type<tc>} {
    %c0 = arith.constant 0 : index
    %c0_0 = arith.constant 0 : index
    %0 = vector.load %arg0[%c0, %c0_0] : memref<8x8xf32, #tpu.memory_space<vmem>>, vector<8x8xf32>
    %c0_1 = arith.constant 0 : index
    %c0_2 = arith.constant 0 : index
    %1 = vector.load %arg1[%c0_1, %c0_2] : memref<8x16xf32, #tpu.memory_space<vmem>>, vector<8x16xf32>
    %cst = arith.constant dense<0.000000e+00> : vector<8x16xf32>
    %2 = tpu.matmul %0, %1, %cst {dimension_numbers = #tpu.dot_dimension_numbers<[1], [0], [0], [1], [0, 0, 1, 1], [], []>} : vector<8x8xf32>, vector<8x16xf32>, vector<8x16xf32> -> vector<8x16xf32>
    %c0_3 = arith.constant 0 : index
    %c0_4 = arith.constant 0 : index
    %3 = vector.load %arg2[%c0_3, %c0_4] : memref<16x32xf32, #tpu.memory_space<vmem>>, vector<16x32xf32>
    %cst_5 = arith.constant dense<0.000000e+00> : vector<8x32xf32>
    %4 = tpu.matmul %2, %3, %cst_5 {dimension_numbers = #tpu.dot_dimension_numbers<[1], [0], [0], [1], [0, 0, 1, 1], [], []>} : vector<8x16xf32>, vector<16x32xf32>, vector<8x32xf32> -> vector<8x32xf32>
    %c0_6 = arith.constant 0 : index
    %c0_7 = arith.constant 0 : index
    %5 = vector.load %arg3[%c0_6, %c0_7] : memref<1x32xf32, #tpu.memory_space<vmem>>, vector<1x32xf32>
    %6 = vector.broadcast %5 : vector<1x32xf32> to vector<8x32xf32>
    %7 = arith.addf %4, %6 : vector<8x32xf32>
    %cst_8 = arith.constant 0.000000e+00 : f32
    %8 = vector.broadcast %cst_8 : f32 to vector<8x32xf32>
    %9 = arith.maximumf %7, %8 : vector<8x32xf32>
    %c0_9 = arith.constant 0 : index
    %c0_10 = arith.constant 0 : index
    %10 = vector.load %arg4[%c0_9, %c0_10] : memref<32x32xf32, #tpu.memory_space<vmem>>, vector<32x32xf32>
    %c0_11 = arith.constant 0 : index
    %c0_12 = arith.constant 0 : index
    %11 = vector.load %arg5[%c0_11, %c0_12] : memref<1x32xf32, #tpu.memory_space<vmem>>, vector<1x32xf32>
    %cst_13 = arith.constant dense<0.000000e+00> : vector<8x32xf32>
    %12 = tpu.matmul %9, %10, %cst_13 {dimension_numbers = #tpu.dot_dimension_numbers<[1], [0], [0], [1], [0, 0, 1, 1], [], []>} : vector<8x32xf32>, vector<32x32xf32>, vector<8x32xf32> -> vector<8x32xf32>
    %cst_14 = arith.constant dense<0.000000e+00> : vector<8x32xf32>
    %13 = tpu.matmul %0, %12, %cst_14 {dimension_numbers = #tpu.dot_dimension_numbers<[1], [0], [0], [1], [0, 0, 1, 1], [], []>} : vector<8x8xf32>, vector<8x32xf32>, vector<8x32xf32> -> vector<8x32xf32>
    %14 = vector.broadcast %11 : vector<1x32xf32> to vector<8x32xf32>
    %15 = arith.addf %13, %14 : vector<8x32xf32>
    %cst_15 = arith.constant 0.000000e+00 : f32
    %16 = vector.broadcast %cst_15 : f32 to vector<8x32xf32>
    %17 = arith.maximumf %15, %16 : vector<8x32xf32>
    %c0_16 = arith.constant 0 : index
    %c0_17 = arith.constant 0 : index
    %18 = vector.load %arg6[%c0_16, %c0_17] : memref<32x8xf32, #tpu.memory_space<vmem>>, vector<32x8xf32>
    %19 = tpu.concatenate %18, %10 in 1 : vector<32x8xf32>, vector<32x32xf32> -> vector<32x40xf32>
    %c0_18 = arith.constant 0 : index
    %c0_19 = arith.constant 0 : index
    %20 = vector.load %arg7[%c0_18, %c0_19] : memref<1x8xf32, #tpu.memory_space<vmem>>, vector<1x8xf32>
    %21 = tpu.concatenate %20, %11 in 1 : vector<1x8xf32>, vector<1x32xf32> -> vector<1x40xf32>
    %cst_20 = arith.constant dense<0.000000e+00> : vector<8x40xf32>
    %22 = tpu.matmul %17, %19, %cst_20 {dimension_numbers = #tpu.dot_dimension_numbers<[1], [0], [0], [1], [0, 0, 1, 1], [], []>} : vector<8x32xf32>, vector<32x40xf32>, vector<8x40xf32> -> vector<8x40xf32>
    %cst_21 = arith.constant dense<0.000000e+00> : vector<8x40xf32>
    %23 = tpu.matmul %0, %22, %cst_21 {dimension_numbers = #tpu.dot_dimension_numbers<[1], [0], [0], [1], [0, 0, 1, 1], [], []>} : vector<8x8xf32>, vector<8x40xf32>, vector<8x40xf32> -> vector<8x40xf32>
    %24 = vector.broadcast %21 : vector<1x40xf32> to vector<8x40xf32>
    %25 = arith.addf %23, %24 : vector<8x40xf32>
    %26 = tpu.iota {dimensions = array<i32: 1>} : vector<8x40xi32>
    %c8_i32 = arith.constant 8 : i32
    %27 = vector.broadcast %c8_i32 : i32 to vector<8x40xi32>
    %28 = arith.cmpi sge, %26, %27 : vector<8x40xi32>
    %cst_22 = arith.constant 0.000000e+00 : f32
    %29 = vector.broadcast %cst_22 : f32 to vector<8x40xf32>
    %30 = arith.maximumf %25, %29 : vector<8x40xf32>
    %31 = arith.select %28, %30, %25 : vector<8x40xi1>, vector<8x40xf32>
    %cst_23 = arith.constant 0.000000e+00 : f32
    %32 = vector.broadcast %cst_23 : f32 to vector<8x56xf32>
    %33 = tpu.concatenate %31, %17, %32 in 1 : vector<8x40xf32>, vector<8x32xf32>, vector<8x56xf32> -> vector<8x128xf32>
    %c0_24 = arith.constant 0 : index
    %c0_25 = arith.constant 0 : index
    %34 = vector.load %arg8[%c0_24, %c0_25] : memref<8x128xf32, #tpu.memory_space<vmem>>, vector<8x128xf32>
    tpu.vector_store %arg8[%c0_24, %c0_25], %33 {strides = array<i32>} : memref<8x128xf32, #tpu.memory_space<vmem>>, vector<8x128xf32>,
    return
  }
}

</mosaic_0001>

<llo_original>
// kernel: slp_gcn_4node_forward.1
$region0: #{slp_gcn_4node_forward.1}
  #allocation0 [shape = 'u32[]', space=smem, size = 0x4, offset = 0x4, fixed_abs, tag = 'smem constant byte address 0x4 - core index']
  #allocation1 [shape = 'u32[144,128]{1,0:T(1,128)}', space=vmem, size = 0x12000, scoped, tag = 'internal scratch']
  %s0 = inlined_call_operand.vmem [shape: f32[8,8], index: 0, kind: input, shape index: {}]
  %s1 = inlined_call_operand.hbm [shape: f32[8,16], index: 1, kind: input, shape index: {}]
  %s2 = inlined_call_operand.vmem [shape: f32[16,32], index: 2, kind: input, shape index: {}]
  %s3 = inlined_call_operand.vmem [shape: f32[1,32], index: 3, kind: input, shape index: {}]
  %s4 = inlined_call_operand.vmem [shape: f32[32,32], index: 4, kind: input, shape index: {}]
  %s5 = inlined_call_operand.vmem [shape: f32[1,32], index: 5, kind: input, shape index: {}]
  %s6 = inlined_call_operand.vmem [shape: f32[32,8], index: 6, kind: input, shape index: {}]
  %s7 = inlined_call_operand.vmem [shape: f32[1,8], index: 7, kind: input, shape index: {}]
  %s8 = inlined_call_operand.vmem [shape: f32[8,128], index: 8, kind: output, shape index: {}]
  %s9 = sld [smem:[#allocation0]]
  $region46: #{slp_gcn_4node_forward.1} parent=0
    _
  %s11 = ssub.s32 1, %s9
  %s12 = scalar_select 0, %s11, %s9
  $region1: #{slp_gcn_4node_forward.1} parent=0
    #allocation2 [shape = 'u8[4096]{0}', space=vmem, size = 0x1000, scoped, tag = 'input window, operand 1, single buffered']
    #allocation3 [shape = 's32[1]{0}', space=sflag, size = 0x4, scoped, tag = 'scoped memory for slp_gcn_4node_forward.1']
    %13 = vsyncpa [#allocation3], 0
    // Predicated region
    $region2: #{slp_gcn_4node_forward.1} parent=1 // pred_check
      _
    $region3: #{slp_gcn_4node_forward.1} parent=1 // pred_check_branch
      %15 = sbr.rel (0) target = $region5
    $region4: #{slp_gcn_4node_forward.1} parent=1 // pred_region
      _
    $region5: #{slp_gcn_4node_forward.1} parent=1 // pred_fallthru
      _
    // Predicated region
    $region6: #{slp_gcn_4node_forward.1} parent=1 // pred_check
      _
    $region7: #{slp_gcn_4node_forward.1} parent=1 // pred_check_branch
      %17 = sbr.rel (0) target = $region9
    $region8: #{slp_gcn_4node_forward.1} parent=1 // pred_region
      %s19 = ssub.s32 128, 128
      %20 = vsyncadd [#allocation3], %s19
      %s22 = sshll.u32 [#allocation2], 4
      %s23 = int_to_ptr.vmem [resolvable:$true] %s22
      %25 = dma.hbm_to_vmem [thread:$0]  %s1, 128, %s23, [#allocation3]
    $region9: #{slp_gcn_4node_forward.1} parent=1 // pred_fallthru
      _
    // Predicated region
    $region10: #{slp_gcn_4node_forward.1} parent=1 // pred_check
      _
    $region11: #{slp_gcn_4node_forward.1} parent=1 // pred_check_branch
      %27 = sbr.rel (0) target = $region13
    $region12: #{slp_gcn_4node_forward.1} parent=1 // pred_region
      _
    $region13: #{slp_gcn_4node_forward.1} parent=1 // pred_fallthru
      _
    // Predicated region
    $region14: #{slp_gcn_4node_forward.1} parent=1 // pred_check
      _
    $region15: #{slp_gcn_4node_forward.1} parent=1 // pred_check_branch
      %29 = sbr.rel (0) target = $region17
    $region16: #{slp_gcn_4node_forward.1} parent=1 // pred_region
      _
    $region17: #{slp_gcn_4node_forward.1} parent=1 // pred_fallthru
      _
    // Predicated region
    $region18: #{slp_gcn_4node_forward.1} parent=1 // pred_check
      _
    $region19: #{slp_gcn_4node_forward.1} parent=1 // pred_check_branch
      %31 = sbr.rel (0) target = $region21
    $region20: #{slp_gcn_4node_forward.1} parent=1 // pred_region
      _
    $region21: #{slp_gcn_4node_forward.1} parent=1 // pred_fallthru
      _
    // Predicated region
    $region22: #{slp_gcn_4node_forward.1} parent=1 // pred_check
      _
    $region23: #{slp_gcn_4node_forward.1} parent=1 // pred_check_branch
      %33 = sbr.rel (0) target = $region25
    $region24: #{slp_gcn_4node_forward.1} parent=1 // pred_region
      _
    $region25: #{slp_gcn_4node_forward.1} parent=1 // pred_fallthru
      _
    // Predicated region
    $region26: #{slp_gcn_4node_forward.1} parent=1 // pred_check
      _
    $region27: #{slp_gcn_4node_forward.1} parent=1 // pred_check_branch
      %35 = sbr.rel (0) target = $region29
    $region28: #{slp_gcn_4node_forward.1} parent=1 // pred_region
      _
    $region29: #{slp_gcn_4node_forward.1} parent=1 // pred_fallthru
      _
    // Predicated region
    $region30: #{slp_gcn_4node_forward.1} parent=1 // pred_check
      _
    $region31: #{slp_gcn_4node_forward.1} parent=1 // pred_check_branch
      %37 = sbr.rel (0) target = $region33
    $region32: #{slp_gcn_4node_forward.1} parent=1 // pred_region
      _
    $region33: #{slp_gcn_4node_forward.1} parent=1 // pred_fallthru
      _
    // Predicated region
    $region34: #{slp_gcn_4node_forward.1} parent=1 // pred_check
      _
    $region35: #{slp_gcn_4node_forward.1} parent=1 // pred_check_branch
      %39 = sbr.rel (0) target = $region37
    $region36: #{slp_gcn_4node_forward.1} parent=1 // pred_region
      %40 = dma.done [#allocation3], 128
    $region37: #{slp_gcn_4node_forward.1} parent=1 // pred_fallthru
      _
    %v41 = vld [vmem:[%s0] sm:$0xff]
    %v42 = vld [vmem:[#allocation2] sm:$0xff]
    %vm43 = vcmask 64512
    %v45 = vsel %vm43, %v41, 0
    %47 = vmatprep.subr.mxu0 0.0
    %48 = vmatpush1.msra.mxu0 %v42
    %49 = vmatprep.subr.mxu0 0.0
    %50 = vmatpush1.msra.mxu0 0.0
    %51 = vmatprep.subr.mxu0 0.0
    %52 = vmatpush1.msra.mxu0 0.0
    %53 = vmatprep.subr.mxu0 0.0
    %54 = vmatpush1.msra.mxu0 0.0
    %55 = vmatprep.subr.mxu0 0.0
    %56 = vmatpush1.msra.mxu0 0.0
    %57 = vmatprep.subr.mxu0 0.0
    %58 = vmatpush1.msra.mxu0 0.0
    %59 = vmatprep.subr.mxu0 0.0
    %60 = vmatpush1.msra.mxu0 0.0
    %61 = vmatprep.subr.mxu0 0.0
    %62 = vmatpush1.msra.mxu0 0.0
    %63 = vmatprep.subr.mxu0 0.0
    %64 = vmatpush1.msra.mxu0 0.0
    %65 = vmatprep.subr.mxu0 0.0
    %66 = vmatpush1.msra.mxu0 0.0
    %67 = vmatprep.subr.mxu0 0.0
    %68 = vmatpush1.msra.mxu0 0.0
    %69 = vmatprep.subr.mxu0 0.0
    %70 = vmatpush1.msra.mxu0 0.0
    %71 = vmatprep.subr.mxu0 0.0
    %72 = vmatpush1.msra.mxu0 0.0
    %73 = vmatprep.subr.mxu0 0.0
    %74 = vmatpush1.msra.mxu0 0.0
    %75 = vmatprep.subr.mxu0 0.0
    %76 = vmatpush1.msra.mxu0 0.0
    %77 = vmatprep.subr.mxu0 0.0
    %78 = vmatpush1.msra.mxu0 0.0
    %79 = vmatprep.subr.mxu0 0.0
    %80 = vmatpush1.msra.mxu0 0.0
    %81 = vmatprep.subr.mxu0 0.0
    %82 = vmatpush1.msra.mxu0 0.0
    %83 = vmatprep.subr.mxu0 0.0
    %84 = vmatpush1.msra.mxu0 0.0
    %85 = vmatprep.subr.mxu0 0.0
    %86 = vmatpush1.msra.mxu0 0.0
    %87 = vmatprep.subr.mxu0 0.0
    %88 = vmatpush1.msra.mxu0 0.0
    %89 = vmatprep.subr.mxu0 0.0
    %90 = vmatpush1.msra.mxu0 0.0
    %91 = vmatprep.subr.mxu0 0.0
    %92 = vmatpush1.msra.mxu0 0.0
    %93 = vmatprep.subr.mxu0 0.0
    %94 = vmatpush1.msra.mxu0 0.0
    %95 = vmatprep.subr.mxu0 0.0
    %96 = vmatpush1.msra.mxu0 0.0
    %97 = vmatprep.subr.mxu0 0.0
    %98 = vmatpush1.msra.mxu0 0.0
    %99 = vmatprep.subr.mxu0 0.0
    %100 = vmatpush1.msra.mxu0 0.0
    %101 = vmatprep.subr.mxu0 0.0
    %102 = vmatpush1.msra.mxu0 0.0
    %103 = vmatprep.subr.mxu0 0.0
    %104 = vmatpush1.msra.mxu0 0.0
    %105 = vmatprep.subr.mxu0 0.0
    %106 = vmatpush1.msra.mxu0 0.0
    %107 = vmatprep.subr.mxu0 0.0
    %108 = vmatpush1.msra.mxu0 0.0
    %109 = vmatprep.subr.mxu0 0.0
    %110 = vmatpush1.msra.mxu0 0.0
    %111 = vmatprep.mubr.f32.mxu0 0.0
    %112 = vmatmul.mubr.f32.gmra.mrb[0].mxu0 %v45
    %v113 = vpop.f32.mrb[0].mxu0
    %v114 = vadd.f32 0.0, %v113
    %v115 = vpop.f32.mrb[0].mxu0
    %116 = vdwg.mxu0
    %v117 = vld [vmem:[%s2] sm:$0xff]
    %v118 = vld [vmem:[%s2 + $0x8] sm:$0xff]
    %v119 = vld [vmem:[%s3] sm:$0x1]
    %v121 = vlaneseq
    %v122 = vshrl.u32 %v121, 7
    %v123 = vsub.s32 0, %v122
    %v124 = vrot.slane %v119, %v123
    %vm126 = vcmask 130048
    %v128 = vsel %vm126, %v114, 0
    %130 = vmatprep.subr.mxu0 0.0
    %131 = vmatpush1.msra.mxu0 %v117
    %132 = vmatprep.subr.mxu0 0.0
    %133 = vmatpush1.msra.mxu0 %v118
    %134 = vmatprep.subr.mxu0 0.0
    %135 = vmatpush1.msra.mxu0 0.0
    %136 = vmatprep.subr.mxu0 0.0
    %137 = vmatpush1.msra.mxu0 0.0
    %138 = vmatprep.subr.mxu0 0.0
    %139 = vmatpush1.msra.mxu0 0.0
    %140 = vmatprep.subr.mxu0 0.0
    %141 = vmatpush1.msra.mxu0 0.0
    %142 = vmatprep.subr.mxu0 0.0
    %143 = vmatpush1.msra.mxu0 0.0
    %144 = vmatprep.subr.mxu0 0.0
    %145 = vmatpush1.msra.mxu0 0.0
    %146 = vmatprep.subr.mxu0 0.0
    %147 = vmatpush1.msra.mxu0 0.0
    %148 = vmatprep.subr.mxu0 0.0
    %149 = vmatpush1.msra.mxu0 0.0
    %150 = vmatprep.subr.mxu0 0.0
    %151 = vmatpush1.msra.mxu0 0.0
    %152 = vmatprep.subr.mxu0 0.0
    %153 = vmatpush1.msra.mxu0 0.0
    %154 = vmatprep.subr.mxu0 0.0
    %155 = vmatpush1.msra.mxu0 0.0
    %156 = vmatprep.subr.mxu0 0.0
    %157 = vmatpush1.msra.mxu0 0.0
    %158 = vmatprep.subr.mxu0 0.0
    %159 = vmatpush1.msra.mxu0 0.0
    %160 = vmatprep.subr.mxu0 0.0
    %161 = vmatpush1.msra.mxu0 0.0
    %162 = vmatprep.subr.mxu0 0.0
    %163 = vmatpush1.msra.mxu0 0.0
    %164 = vmatprep.subr.mxu0 0.0
    %165 = vmatpush1.msra.mxu0 0.0
    %166 = vmatprep.subr.mxu0 0.0
    %167 = vmatpush1.msra.mxu0 0.0
    %168 = vmatprep.subr.mxu0 0.0
    %169 = vmatpush1.msra.mxu0 0.0
    %170 = vmatprep.subr.mxu0 0.0
    %171 = vmatpush1.msra.mxu0 0.0
    %172 = vmatprep.subr.mxu0 0.0
    %173 = vmatpush1.msra.mxu0 0.0
    %174 = vmatprep.subr.mxu0 0.0
    %175 = vmatpush1.msra.mxu0 0.0
    %176 = vmatprep.subr.mxu0 0.0
    %177 = vmatpush1.msra.mxu0 0.0
    %178 = vmatprep.subr.mxu0 0.0
    %179 = vmatpush1.msra.mxu0 0.0
    %180 = vmatprep.subr.mxu0 0.0
    %181 = vmatpush1.msra.mxu0 0.0
    %182 = vmatprep.subr.mxu0 0.0
    %183 = vmatpush1.msra.mxu0 0.0
    %184 = vmatprep.subr.mxu0 0.0
    %185 = vmatpush1.msra.mxu0 0.0
    %186 = vmatprep.subr.mxu0 0.0
    %187 = vmatpush1.msra.mxu0 0.0
    %188 = vmatprep.subr.mxu0 0.0
    %189 = vmatpush1.msra.mxu0 0.0
    %190 = vmatprep.subr.mxu0 0.0
    %191 = vmatpush1.msra.mxu0 0.0
    %192 = vmatprep.subr.mxu0 0.0
    %193 = vmatpush1.msra.mxu0 0.0
    %194 = vmatprep.mubr.f32.mxu0 0.0
    %195 = vmatmul.mubr.f32.gmra.mrb[0].mxu0 %v128
    %v196 = vpop.f32.mrb[0].mxu0
    %v197 = vadd.f32 %v124, %v196
    %v198 = vpop.f32.mrb[0].mxu0
    %199 = vdwg.mxu0
    %v200 = vmax.f32 %v197, 0.0
    %v201 = vld [vmem:[%s4] sm:$0xff]
    %v202 = vld [vmem:[%s4 + $0x8] sm:$0xff]
    %v203 = vld [vmem:[%s4 + $0x10] sm:$0xff]
    %v204 = vld [vmem:[%s4 + $0x18] sm:$0xff]
    %v205 = vld [vmem:[%s5] sm:$0x1]
    %vm206 = vcmask 261120
    %v208 = vsel %vm206, %v200, 0
    %210 = vmatprep.subr.mxu0 0.0
    %211 = vmatpush1.msra.mxu0 %v201
    %212 = vmatprep.subr.mxu0 0.0
    %213 = vmatpush1.msra.mxu0 %v202
    %214 = vmatprep.subr.mxu0 0.0
    %215 = vmatpush1.msra.mxu0 %v203
    %216 = vmatprep.subr.mxu0 0.0
    %217 = vmatpush1.msra.mxu0 %v204
    %218 = vmatprep.subr.mxu0 0.0
    %219 = vmatpush1.msra.mxu0 0.0
    %220 = vmatprep.subr.mxu0 0.0
    %221 = vmatpush1.msra.mxu0 0.0
    %222 = vmatprep.subr.mxu0 0.0
    %223 = vmatpush1.msra.mxu0 0.0
    %224 = vmatprep.subr.mxu0 0.0
    %225 = vmatpush1.msra.mxu0 0.0
    %226 = vmatprep.subr.mxu0 0.0
    %227 = vmatpush1.msra.mxu0 0.0
    %228 = vmatprep.subr.mxu0 0.0
    %229 = vmatpush1.msra.mxu0 0.0
    %230 = vmatprep.subr.mxu0 0.0
    %231 = vmatpush1.msra.mxu0 0.0
    %232 = vmatprep.subr.mxu0 0.0
    %233 = vmatpush1.msra.mxu0 0.0
    %234 = vmatprep.subr.mxu0 0.0
    %235 = vmatpush1.msra.mxu0 0.0
    %236 = vmatprep.subr.mxu0 0.0
    %237 = vmatpush1.msra.mxu0 0.0
    %238 = vmatprep.subr.mxu0 0.0
    %239 = vmatpush1.msra.mxu0 0.0
    %240 = vmatprep.subr.mxu0 0.0
    %241 = vmatpush1.msra.mxu0 0.0
    %242 = vmatprep.subr.mxu0 0.0
    %243 = vmatpush1.msra.mxu0 0.0
    %244 = vmatprep.subr.mxu0 0.0
    %245 = vmatpush1.msra.mxu0 0.0
    %246 = vmatprep.subr.mxu0 0.0
    %247 = vmatpush1.msra.mxu0 0.0
    %248 = vmatprep.subr.mxu0 0.0
    %249 = vmatpush1.msra.mxu0 0.0
    %250 = vmatprep.subr.mxu0 0.0
    %251 = vmatpush1.msra.mxu0 0.0
    %252 = vmatprep.subr.mxu0 0.0
    %253 = vmatpush1.msra.mxu0 0.0
    %254 = vmatprep.subr.mxu0 0.0
    %255 = vmatpush1.msra.mxu0 0.0
    %256 = vmatprep.subr.mxu0 0.0
    %257 = vmatpush1.msra.mxu0 0.0
    %258 = vmatprep.subr.mxu0 0.0
    %259 = vmatpush1.msra.mxu0 0.0
    %260 = vmatprep.subr.mxu0 0.0
    %261 = vmatpush1.msra.mxu0 0.0
    %262 = vmatprep.subr.mxu0 0.0
    %263 = vmatpush1.msra.mxu0 0.0
    %264 = vmatprep.subr.mxu0 0.0
    %265 = vmatpush1.msra.mxu0 0.0
    %266 = vmatprep.subr.mxu0 0.0
    %267 = vmatpush1.msra.mxu0 0.0
    %268 = vmatprep.subr.mxu0 0.0
    %269 = vmatpush1.msra.mxu0 0.0
    %270 = vmatprep.subr.mxu0 0.0
    %271 = vmatpush1.msra.mxu0 0.0
    %272 = vmatprep.subr.mxu0 0.0
    %273 = vmatpush1.msra.mxu0 0.0
    %274 = vmatprep.mubr.f32.mxu0 0.0
    %275 = vmatmul.mubr.f32.gmra.mrb[0].mxu0 %v208
    %v276 = vpop.f32.mrb[0].mxu0
    %v277 = vadd.f32 0.0, %v276
    %v278 = vpop.f32.mrb[0].mxu0
    %279 = vdwg.mxu0
    %v281 = vlaneseq
    %v282 = vshrl.u32 %v281, 7
    %v283 = vsub.s32 0, %v282
    %v284 = vrot.slane %v205, %v283
    %286 = vmatprep.subr.mxu0 0.0
    %287 = vmatpush1.msra.mxu0 %v277
    %288 = vmatprep.subr.mxu0 0.0
    %289 = vmatpush1.msra.mxu0 0.0
    %290 = vmatprep.subr.mxu0 0.0
    %291 = vmatpush1.msra.mxu0 0.0
    %292 = vmatprep.subr.mxu0 0.0
    %293 = vmatpush1.msra.mxu0 0.0
    %294 = vmatprep.subr.mxu0 0.0
    %295 = vmatpush1.msra.mxu0 0.0
    %296 = vmatprep.subr.mxu0 0.0
    %297 = vmatpush1.msra.mxu0 0.0
    %298 = vmatprep.subr.mxu0 0.0
    %299 = vmatpush1.msra.mxu0 0.0
    %300 = vmatprep.subr.mxu0 0.0
    %301 = vmatpush1.msra.mxu0 0.0
    %302 = vmatprep.subr.mxu0 0.0
    %303 = vmatpush1.msra.mxu0 0.0
    %304 = vmatprep.subr.mxu0 0.0
    %305 = vmatpush1.msra.mxu0 0.0
    %306 = vmatprep.subr.mxu0 0.0
    %307 = vmatpush1.msra.mxu0 0.0
    %308 = vmatprep.subr.mxu0 0.0
    %309 = vmatpush1.msra.mxu0 0.0
    %310 = vmatprep.subr.mxu0 0.0
    %311 = vmatpush1.msra.mxu0 0.0
    %312 = vmatprep.subr.mxu0 0.0
    %313 = vmatpush1.msra.mxu0 0.0
    %314 = vmatprep.subr.mxu0 0.0
    %315 = vmatpush1.msra.mxu0 0.0
    %316 = vmatprep.subr.mxu0 0.0
    %317 = vmatpush1.msra.mxu0 0.0
    %318 = vmatprep.subr.mxu0 0.0
    %319 = vmatpush1.msra.mxu0 0.0
    %320 = vmatprep.subr.mxu0 0.0
    %321 = vmatpush1.msra.mxu0 0.0
    %322 = vmatprep.subr.mxu0 0.0
    %323 = vmatpush1.msra.mxu0 0.0
    %324 = vmatprep.subr.mxu0 0.0
    %325 = vmatpush1.msra.mxu0 0.0
    %326 = vmatprep.subr.mxu0 0.0
    %327 = vmatpush1.msra.mxu0 0.0
    %328 = vmatprep.subr.mxu0 0.0
    %329 = vmatpush1.msra.mxu0 0.0
    %330 = vmatprep.subr.mxu0 0.0
    %331 = vmatpush1.msra.mxu0 0.0
    %332 = vmatprep.subr.mxu0 0.0
    %333 = vmatpush1.msra.mxu0 0.0
    %334 = vmatprep.subr.mxu0 0.0
    %335 = vmatpush1.msra.mxu0 0.0
    %336 = vmatprep.subr.mxu0 0.0
    %337 = vmatpush1.msra.mxu0 0.0
    %338 = vmatprep.subr.mxu0 0.0
    %339 = vmatpush1.msra.mxu0 0.0
    %340 = vmatprep.subr.mxu0 0.0
    %341 = vmatpush1.msra.mxu0 0.0
    %342 = vmatprep.subr.mxu0 0.0
    %343 = vmatpush1.msra.mxu0 0.0
    %344 = vmatprep.subr.mxu0 0.0
    %345 = vmatpush1.msra.mxu0 0.0
    %346 = vmatprep.subr.mxu0 0.0
    %347 = vmatpush1.msra.mxu0 0.0
    %348 = vmatprep.subr.mxu0 0.0
    %349 = vmatpush1.msra.mxu0 0.0
    %350 = vmatprep.mubr.f32.mxu0 0.0
    %351 = vmatmul.mubr.f32.gmra.mrb[0].mxu0 %v45
    %v352 = vpop.f32.mrb[0].mxu0
    %v353 = vadd.f32 %v284, %v352
    %v354 = vpop.f32.mrb[0].mxu0
    %355 = vdwg.mxu0
    %v356 = vmax.f32 %v353, 0.0
    %v357 = vld [vmem:[%s6] sm:$0xff]
    %v358 = vld [vmem:[%s6 + $0x8] sm:$0xff]
    %v359 = vld [vmem:[%s6 + $0x10] sm:$0xff]
    %v360 = vld [vmem:[%s6 + $0x18] sm:$0xff]
    %365 = vrot.lane.b32.xlu0 %v201, 8
    %v366 = vpop.permute.xlu0 %365
    %367 = vrot.lane.b32.xlu0 %v202, 8
    %v368 = vpop.permute.xlu0 %367
    %369 = vrot.lane.b32.xlu0 %v203, 8
    %v370 = vpop.permute.xlu0 %369
    %371 = vrot.lane.b32.xlu0 %v204, 8
    %v372 = vpop.permute.xlu0 %371
    %v377 = vsel %vm43, %v357, %v366
    %v378 = vsel %vm43, %v358, %v368
    %v379 = vsel %vm43, %v359, %v370
    %v380 = vsel %vm43, %v360, %v372
    %v381 = vld [vmem:[%s7] sm:$0x1]
    %382 = vrot.lane.b32.xlu0 %v284, 8
    %v383 = vpop.permute.xlu0 %382
    %v385 = vsel %vm43, %v381, %v383
    %v387 = vsel %vm206, %v356, 0
    %389 = vmatprep.subr.mxu0 0.0
    %390 = vmatpush1.msra.mxu0 %v377
    %391 = vmatprep.subr.mxu0 0.0
    %392 = vmatpush1.msra.mxu0 %v378
    %393 = vmatprep.subr.mxu0 0.0
    %394 = vmatpush1.msra.mxu0 %v379
    %395 = vmatprep.subr.mxu0 0.0
    %396 = vmatpush1.msra.mxu0 %v380
    %397 = vmatprep.subr.mxu0 0.0
    %398 = vmatpush1.msra.mxu0 0.0
    %399 = vmatprep.subr.mxu0 0.0
    %400 = vmatpush1.msra.mxu0 0.0
    %401 = vmatprep.subr.mxu0 0.0
    %402 = vmatpush1.msra.mxu0 0.0
    %403 = vmatprep.subr.mxu0 0.0
    %404 = vmatpush1.msra.mxu0 0.0
    %405 = vmatprep.subr.mxu0 0.0
    %406 = vmatpush1.msra.mxu0 0.0
    %407 = vmatprep.subr.mxu0 0.0
    %408 = vmatpush1.msra.mxu0 0.0
    %409 = vmatprep.subr.mxu0 0.0
    %410 = vmatpush1.msra.mxu0 0.0
    %411 = vmatprep.subr.mxu0 0.0
    %412 = vmatpush1.msra.mxu0 0.0
    %413 = vmatprep.subr.mxu0 0.0
    %414 = vmatpush1.msra.mxu0 0.0
    %415 = vmatprep.subr.mxu0 0.0
    %416 = vmatpush1.msra.mxu0 0.0
    %417 = vmatprep.subr.mxu0 0.0
    %418 = vmatpush1.msra.mxu0 0.0
    %419 = vmatprep.subr.mxu0 0.0
    %420 = vmatpush1.msra.mxu0 0.0
    %421 = vmatprep.subr.mxu0 0.0
    %422 = vmatpush1.msra.mxu0 0.0
    %423 = vmatprep.subr.mxu0 0.0
    %424 = vmatpush1.msra.mxu0 0.0
    %425 = vmatprep.subr.mxu0 0.0
    %426 = vmatpush1.msra.mxu0 0.0
    %427 = vmatprep.subr.mxu0 0.0
    %428 = vmatpush1.msra.mxu0 0.0
    %429 = vmatprep.subr.mxu0 0.0
    %430 = vmatpush1.msra.mxu0 0.0
    %431 = vmatprep.subr.mxu0 0.0
    %432 = vmatpush1.msra.mxu0 0.0
    %433 = vmatprep.subr.mxu0 0.0
    %434 = vmatpush1.msra.mxu0 0.0
    %435 = vmatprep.subr.mxu0 0.0
    %436 = vmatpush1.msra.mxu0 0.0
    %437 = vmatprep.subr.mxu0 0.0
    %438 = vmatpush1.msra.mxu0 0.0
    %439 = vmatprep.subr.mxu0 0.0
    %440 = vmatpush1.msra.mxu0 0.0
    %441 = vmatprep.subr.mxu0 0.0
    %442 = vmatpush1.msra.mxu0 0.0
    %443 = vmatprep.subr.mxu0 0.0
    %444 = vmatpush1.msra.mxu0 0.0
    %445 = vmatprep.subr.mxu0 0.0
    %446 = vmatpush1.msra.mxu0 0.0
    %447 = vmatprep.subr.mxu0 0.0
    %448 = vmatpush1.msra.mxu0 0.0
    %449 = vmatprep.subr.mxu0 0.0
    %450 = vmatpush1.msra.mxu0 0.0
    %451 = vmatprep.subr.mxu0 0.0
    %452 = vmatpush1.msra.mxu0 0.0
    %453 = vmatprep.mubr.f32.mxu0 0.0
    %454 = vmatmul.mubr.f32.gmra.mrb[0].mxu0 %v387
    %v455 = vpop.f32.mrb[0].mxu0
    %v456 = vadd.f32 0.0, %v455
    %v457 = vpop.f32.mrb[0].mxu0
    %458 = vdwg.mxu0
    %v459 = vlaneseq
    %v460 = vshrl.u32 %v459, 7
    %v461 = vsub.s32 0, %v460
    %v462 = vrot.slane %v385, %v461
    %463 = vmatprep.subr.mxu0 0.0
    %464 = vmatpush1.msra.mxu0 %v456
    %465 = vmatprep.subr.mxu0 0.0
    %466 = vmatpush1.msra.mxu0 0.0
    %467 = vmatprep.subr.mxu0 0.0
    %468 = vmatpush1.msra.mxu0 0.0
    %469 = vmatprep.subr.mxu0 0.0
    %470 = vmatpush1.msra.mxu0 0.0
    %471 = vmatprep.subr.mxu0 0.0
    %472 = vmatpush1.msra.mxu0 0.0
    %473 = vmatprep.subr.mxu0 0.0
    %474 = vmatpush1.msra.mxu0 0.0
    %475 = vmatprep.subr.mxu0 0.0
    %476 = vmatpush1.msra.mxu0 0.0
    %477 = vmatprep.subr.mxu0 0.0
    %478 = vmatpush1.msra.mxu0 0.0
    %479 = vmatprep.subr.mxu0 0.0
    %480 = vmatpush1.msra.mxu0 0.0
    %481 = vmatprep.subr.mxu0 0.0
    %482 = vmatpush1.msra.mxu0 0.0
    %483 = vmatprep.subr.mxu0 0.0
    %484 = vmatpush1.msra.mxu0 0.0
    %485 = vmatprep.subr.mxu0 0.0
    %486 = vmatpush1.msra.mxu0 0.0
    %487 = vmatprep.subr.mxu0 0.0
    %488 = vmatpush1.msra.mxu0 0.0
    %489 = vmatprep.subr.mxu0 0.0
    %490 = vmatpush1.msra.mxu0 0.0
    %491 = vmatprep.subr.mxu0 0.0
    %492 = vmatpush1.msra.mxu0 0.0
    %493 = vmatprep.subr.mxu0 0.0
    %494 = vmatpush1.msra.mxu0 0.0
    %495 = vmatprep.subr.mxu0 0.0
    %496 = vmatpush1.msra.mxu0 0.0
    %497 = vmatprep.subr.mxu0 0.0
    %498 = vmatpush1.msra.mxu0 0.0
    %499 = vmatprep.subr.mxu0 0.0
    %500 = vmatpush1.msra.mxu0 0.0
    %501 = vmatprep.subr.mxu0 0.0
    %502 = vmatpush1.msra.mxu0 0.0
    %503 = vmatprep.subr.mxu0 0.0
    %504 = vmatpush1.msra.mxu0 0.0
    %505 = vmatprep.subr.mxu0 0.0
    %506 = vmatpush1.msra.mxu0 0.0
    %507 = vmatprep.subr.mxu0 0.0
    %508 = vmatpush1.msra.mxu0 0.0
    %509 = vmatprep.subr.mxu0 0.0
    %510 = vmatpush1.msra.mxu0 0.0
    %511 = vmatprep.subr.mxu0 0.0
    %512 = vmatpush1.msra.mxu0 0.0
    %513 = vmatprep.subr.mxu0 0.0
    %514 = vmatpush1.msra.mxu0 0.0
    %515 = vmatprep.subr.mxu0 0.0
    %516 = vmatpush1.msra.mxu0 0.0
    %517 = vmatprep.subr.mxu0 0.0
    %518 = vmatpush1.msra.mxu0 0.0
    %519 = vmatprep.subr.mxu0 0.0
    %520 = vmatpush1.msra.mxu0 0.0
    %521 = vmatprep.subr.mxu0 0.0
    %522 = vmatpush1.msra.mxu0 0.0
    %523 = vmatprep.subr.mxu0 0.0
    %524 = vmatpush1.msra.mxu0 0.0
    %525 = vmatprep.subr.mxu0 0.0
    %526 = vmatpush1.msra.mxu0 0.0
    %527 = vmatprep.mubr.f32.mxu0 0.0
    %528 = vmatmul.mubr.f32.gmra.mrb[0].mxu0 %v45
    %v529 = vpop.f32.mrb[0].mxu0
    %v530 = vadd.f32 %v462, %v529
    %v531 = vpop.f32.mrb[0].mxu0
    %532 = vdwg.mxu0
    %v533 = vlaneseq
    %v534 = vand.u32 %v533, 127
    %vm535 = vcmp.ge.s32.totalorder %v534, 8
    %v536 = vmax.f32 %v530, 0.0
    %v537 = vsel %vm535, %v536, %v530
    %538 = vrot.lane.b32.xlu0 %v356, 40
    %v539 = vpop.permute.xlu0 %538
    %vm541 = vcmask 326656
    %v542 = vsel %vm541, %v537, %v539
    %vm543 = vcmask 588800
    %v544 = vsel %vm543, %v542, 0.0
    %545 = vst [vmem:[%s8] sm:$0xff] %v544
    // Predicated region
    $region38: #{slp_gcn_4node_forward.1} parent=1 // pred_check
      _
    $region39: #{slp_gcn_4node_forward.1} parent=1 // pred_check_branch
      %547 = sbr.rel (0) target = $region41
    $region40: #{slp_gcn_4node_forward.1} parent=1 // pred_region
      _
    $region41: #{slp_gcn_4node_forward.1} parent=1 // pred_fallthru
      _
    // Predicated region
    $region42: #{slp_gcn_4node_forward.1} parent=1 // pred_check
      _
    $region43: #{slp_gcn_4node_forward.1} parent=1 // pred_check_branch
      %549 = sbr.rel (0) target = $region45
    $region44: #{slp_gcn_4node_forward.1} parent=1 // pred_region
      _
    $region45: #{slp_gcn_4node_forward.1} parent=1 // pred_fallthru
      _
    %550 = vsyncpa [#allocation3], 1

</llo_original>
